<compile_context>
chip_gen: v7x
topology: tpu7x:2x2x1
jax: 0.10.0
libtpu: 0.0.40
codegen_flags: <defaults>
</compile_context>

<pallas_src>
import functools

import jax
import jax.numpy as jnp
from jax import lax
from jax.experimental import pallas as pl
from jax.experimental.pallas import tpu as pltpu


def _highpass_kernel(x_ref, o_ref, *, inv_w_hpf):
    """x_ref/o_ref: (bc_tile, H, W). Depthwise 3x3 high-pass, zero padding."""
    _, H, W = o_ref.shape

    # Compute in f32 (bit-safe vs the reference; for bf16 inputs the HBM traffic
    # stays bf16 either way).
    x = x_ref[...].astype(jnp.float32)

    # ---- vertical 3-tap sum (zero padding above row 0 / below row H-1) ----------
    # pltpu.roll follows jnp.roll semantics: result[i] = x[(i - shift) mod N].
    rows = lax.broadcasted_iota(jnp.int32, x.shape, 1)
    up = pltpu.roll(x, shift=1, axis=1)        # up[:, i, :] = x[:, i-1, :] (wraps at i=0)
    dn = pltpu.roll(x, shift=H - 1, axis=1)    # dn[:, i, :] = x[:, i+1, :] (wraps at i=H-1)
    up = jnp.where(rows == 0, 0.0, up)
    dn = jnp.where(rows == H - 1, 0.0, dn)
    vsum = up + x + dn                         # (bc, H, W)

    # ---- horizontal 3-tap sum (zero padding left of col 0 / right of col W-1) ---
    cols = lax.broadcasted_iota(jnp.int32, x.shape, 2)
    lf = pltpu.roll(vsum, shift=1, axis=2)     # lf[:, :, j] = vsum[:, :, j-1]
    rt = pltpu.roll(vsum, shift=W - 1, axis=2) # rt[:, :, j] = vsum[:, :, j+1]
    lf = jnp.where(cols == 0, 0.0, lf)
    rt = jnp.where(cols == W - 1, 0.0, rt)
    box = lf + vsum + rt                       # 3x3 zero-padded box sum

    # 8*x - (sum of 8 neighbors) == 9*x - box3x3(x); then scale by 1/w_hpf.
    o_ref[...] = ((9.0 * x - box) * inv_w_hpf).astype(o_ref.dtype)


def _tpu_limits():
    """Per-generation (block_bytes, vmem_limit_bytes)."""
    kind = ""
    try:
        kind = jax.devices()[0].device_kind.lower()
    except Exception:
        pass
    if "v7" in kind:                      # 64 MiB VMEM per TC: keep headroom
        return 4 * 1024 * 1024, 48 * 1024 * 1024
    if "v5" in kind or "v6" in kind:      # 128 MiB VMEM: larger blocks amortize overhead
        return 8 * 1024 * 1024, 96 * 1024 * 1024
    return 4 * 1024 * 1024, 48 * 1024 * 1024  # unknown part: conservative


def highpass_pallas(x, w_hpf=1.0, *, block_bytes=None, vmem_limit_bytes=None):
    """Depthwise 3x3 high-pass conv, padding=1. x: (B, C, H, W) -> (B, C, H, W).

    Note: w_hpf is baked as a compile-time Python float (mirrors the PyTorch module
    constructor); it cannot be a traced value and w_hpf == 0 is invalid.
    """
    B, C, H, W = x.shape
    BC = B * C
    x3 = x.reshape(BC, H, W)  # merges leading dims only; no data movement

    default_block, default_vmem = _tpu_limits()
    if block_bytes is None:
        block_bytes = default_block
    if vmem_limit_bytes is None:
        vmem_limit_bytes = default_vmem

    # Planes per grid step: as many whole (H, W) planes as fit under the byte cap.
    # bc_tile need NOT divide BC: a tail block on the leading axis is safe because
    # every plane is processed independently (rolls only act inside a plane), so the
    # out-of-range tail planes compute garbage that is discarded on writeback.
    plane_bytes = H * W * x.dtype.itemsize
    bc_tile = int(max(1, min(BC, block_bytes // plane_bytes)))
    if bc_tile == BC and BC >= 2:
        # Keep >= 2 grid steps so dimension_semantics=("parallel",) can split planes
        # across both TensorCores on megacore parts (v7x).
        bc_tile = pl.cdiv(BC, 2)
    grid = (pl.cdiv(BC, bc_tile),)

    kernel = functools.partial(_highpass_kernel, inv_w_hpf=float(1.0 / w_hpf))

    out3 = pl.pallas_call(
        kernel,
        out_shape=jax.ShapeDtypeStruct((BC, H, W), x.dtype),
        grid_spec=pltpu.PrefetchScalarGridSpec(
            num_scalar_prefetch=0,
            grid=grid,
            in_specs=[pl.BlockSpec((bc_tile, H, W), lambda i: (i, 0, 0))],
            out_specs=pl.BlockSpec((bc_tile, H, W), lambda i: (i, 0, 0)),
        ),
        compiler_params=pltpu.CompilerParams(
            dimension_semantics=("parallel",),
            vmem_limit_bytes=vmem_limit_bytes,
        ),
    )(x3)
    return out3.reshape(B, C, H, W)


def highpass_reference(x, w_hpf=1.0):
    """Pure-JAX reference: depthwise conv2d, padding=1, groups=C (matches F.conv2d)."""
    B, C, H, W = x.shape
    filt = jnp.array([[-1.0, -1.0, -1.0],
                      [-1.0, 8.0, -1.0],
                      [-1.0, -1.0, -1.0]], dtype=jnp.float32) / w_hpf
    w = jnp.broadcast_to(filt[None, None, :, :], (C, 1, 3, 3))
    return lax.conv_general_dilated(
        x, w,
        window_strides=(1, 1),
        padding=((1, 1), (1, 1)),
        dimension_numbers=("NCHW", "OIHW", "NCHW"),
        feature_group_count=C,
    )


if __name__ == "__main__":
    w_hpf = 1.0
    B, C, H, W = 2, 4, 16, 16
    key = jax.random.PRNGKey(0)
    x = jax.random.normal(key, (B, C, H, W), dtype=jnp.float32)

    out = jax.block_until_ready(highpass_pallas(x, w_hpf))
    ref = jax.block_until_ready(highpass_reference(x, w_hpf))

    assert out.shape == (B, C, H, W)
    assert jnp.allclose(out, ref, atol=1e-5, rtol=1e-5), "mismatch vs reference conv"

    print("KERNEL_OK")
</pallas_src>

<mosaic_0001>
module attributes {stable_mosaic.version = 11 : i64} {
  func.func @_highpass_kernel(%arg0: i32, %arg1: memref<4x16x16xf32, #tpu.memory_space<vmem>>, %arg2: memref<4x16x16xf32, #tpu.memory_space<vmem>>) attributes {dimension_semantics = [#tpu.dimension_semantics<parallel>], iteration_bounds = array<i64: 2>, scalar_prefetch = 0 : i64, scratch_operands = 0 : i64, tpu.core_type = #tpu.core_type<tc>, window_params = [{transform_indices = @transform_0, window_bounds = array<i64: 4, 16, 16>}, {transform_indices = @transform_1, window_bounds = array<i64: 4, 16, 16>}]} {
    %c0 = arith.constant 0 : index
    %c0_0 = arith.constant 0 : index
    %c0_1 = arith.constant 0 : index
    %0 = vector.load %arg1[%c0, %c0_0, %c0_1] : memref<4x16x16xf32, #tpu.memory_space<vmem>>, vector<4x16x16xf32>
    %1 = tpu.iota {dimensions = array<i32: 1>} : vector<4x16x16xi32>
    %c1_i32 = arith.constant 1 : i32
    %2 = tpu.dynamic_rotate %0 by %c1_i32 dim 1 : vector<4x16x16xf32>, i32 -> vector<4x16x16xf32>
    %c15_i32 = arith.constant 15 : i32
    %3 = tpu.dynamic_rotate %0 by %c15_i32 dim 1 : vector<4x16x16xf32>, i32 -> vector<4x16x16xf32>
    %c0_i32 = arith.constant 0 : i32
    %4 = vector.broadcast %c0_i32 : i32 to vector<4x16x16xi32>
    %5 = arith.cmpi eq, %1, %4 : vector<4x16x16xi32>
    %cst = arith.constant 0.000000e+00 : f32
    %6 = vector.broadcast %cst : f32 to vector<4x16x16xf32>
    %7 = arith.select %5, %6, %2 : vector<4x16x16xi1>, vector<4x16x16xf32>
    %c15_i32_2 = arith.constant 15 : i32
    %8 = vector.broadcast %c15_i32_2 : i32 to vector<4x16x16xi32>
    %9 = arith.cmpi eq, %1, %8 : vector<4x16x16xi32>
    %cst_3 = arith.constant 0.000000e+00 : f32
    %10 = vector.broadcast %cst_3 : f32 to vector<4x16x16xf32>
    %11 = arith.select %9, %10, %3 : vector<4x16x16xi1>, vector<4x16x16xf32>
    %12 = arith.addf %7, %0 : vector<4x16x16xf32>
    %13 = arith.addf %12, %11 : vector<4x16x16xf32>
    %14 = tpu.iota {dimensions = array<i32: 2>} : vector<4x16x16xi32>
    %c1_i32_4 = arith.constant 1 : i32
    %15 = tpu.dynamic_rotate %13 by %c1_i32_4 dim 2 : vector<4x16x16xf32>, i32 -> vector<4x16x16xf32>
    %c15_i32_5 = arith.constant 15 : i32
    %16 = tpu.dynamic_rotate %13 by %c15_i32_5 dim 2 : vector<4x16x16xf32>, i32 -> vector<4x16x16xf32>
    %c0_i32_6 = arith.constant 0 : i32
    %17 = vector.broadcast %c0_i32_6 : i32 to vector<4x16x16xi32>
    %18 = arith.cmpi eq, %14, %17 : vector<4x16x16xi32>
    %cst_7 = arith.constant 0.000000e+00 : f32
    %19 = vector.broadcast %cst_7 : f32 to vector<4x16x16xf32>
    %20 = arith.select %18, %19, %15 : vector<4x16x16xi1>, vector<4x16x16xf32>
    %c15_i32_8 = arith.constant 15 : i32
    %21 = vector.broadcast %c15_i32_8 : i32 to vector<4x16x16xi32>
    %22 = arith.cmpi eq, %14, %21 : vector<4x16x16xi32>
    %cst_9 = arith.constant 0.000000e+00 : f32
    %23 = vector.broadcast %cst_9 : f32 to vector<4x16x16xf32>
    %24 = arith.select %22, %23, %16 : vector<4x16x16xi1>, vector<4x16x16xf32>
    %25 = arith.addf %20, %13 : vector<4x16x16xf32>
    %26 = arith.addf %25, %24 : vector<4x16x16xf32>
    %cst_10 = arith.constant 9.000000e+00 : f32
    %27 = vector.broadcast %cst_10 : f32 to vector<4x16x16xf32>
    %28 = arith.mulf %27, %0 : vector<4x16x16xf32>
    %29 = arith.subf %28, %26 : vector<4x16x16xf32>
    %cst_11 = arith.constant 1.000000e+00 : f32
    %30 = vector.broadcast %cst_11 : f32 to vector<4x16x16xf32>
    %31 = arith.mulf %29, %30 : vector<4x16x16xf32>
    %c0_12 = arith.constant 0 : index
    %c0_13 = arith.constant 0 : index
    %c0_14 = arith.constant 0 : index
    %32 = vector.load %arg2[%c0_12, %c0_13, %c0_14] : memref<4x16x16xf32, #tpu.memory_space<vmem>>, vector<4x16x16xf32>
    tpu.vector_store %arg2[%c0_12, %c0_13, %c0_14], %31 {strides = array<i32>} : memref<4x16x16xf32, #tpu.memory_space<vmem>>, vector<4x16x16xf32>,
    return
  }
  func.func @transform_0(%arg0: i32) -> (i32, i32, i32) {
    %c0_i32 = arith.constant 0 : i32
    %c0_i32_0 = arith.constant 0 : i32
    %c0_i32_1 = arith.constant 0 : i32
    return %arg0, %c0_i32, %c0_i32_0 : i32, i32, i32
  }
  func.func @transform_1(%arg0: i32) -> (i32, i32, i32) {
    %c0_i32 = arith.constant 0 : i32
    %c0_i32_0 = arith.constant 0 : i32
    %c0_i32_1 = arith.constant 0 : i32
    return %arg0, %c0_i32, %c0_i32_0 : i32, i32, i32
  }
}

</mosaic_0001>

<llo_original>
// kernel: tpu_custom_call.1
$region0: #{tpu_custom_call.1}
  #allocation0 [shape = 'u32[]', space=smem, size = 0x4, offset = 0x4, fixed_abs, tag = 'smem constant byte address 0x4 - core index']
  #allocation1 [shape = 'u32[144,128]{1,0:T(1,128)}', space=vmem, size = 0x12000, scoped, tag = 'internal scratch']
  %s0 = inlined_call_operand.hbm [shape: f32[8,16,16], index: 0, kind: input, shape index: {}]
  %s1 = inlined_call_operand.hbm [shape: f32[8,16,16], index: 1, kind: output, shape index: {}]
  %s2 = sld [smem:[#allocation0]]
  $region41: #{tpu_custom_call.1} parent=0
    _
  %s4 = ssub.s32 1, %s2
  %s5 = scalar_select 0, %s4, %s2
  $region1: #{tpu_custom_call.1} parent=0
    #allocation2 [shape = 'u8[65536]{0}', space=vmem, size = 0x10000, scoped, tag = 'input window, operand 0']
    #allocation3 [shape = 's32[2]{0}', space=sflag, size = 0x8, scoped, tag = 'scoped memory for tpu_custom_call.1']
    #allocation4 [shape = 's32[2]{0}', space=sflag, size = 0x8, scoped, tag = 'scoped memory for tpu_custom_call.1']
    #allocation5 [shape = 'u8[65536]{0}', space=vmem, size = 0x10000, scoped, tag = 'output window, operand 0']
    %6 = vsyncpa [#allocation3], 0
    %s7 = scalar_lea.sflag [#allocation3], 1
    %8 = vsyncpa %s7, 0
    %9 = vsyncpa [#allocation4], 0
    %s10 = scalar_lea.sflag [#allocation4], 1
    %11 = vsyncpa %s10, 0
    loop: start=0, step=1, limit=4
    $region2: #{tpu_custom_call.1} parent=1 // loop_pre_header
      _
    $region3: #{tpu_custom_call.1} parent=1 // loop_header
      %s13 = sphi 0, %s17
      %p14 = scmp.ge.s32.totalorder %s13, 4
      %s23 = sphi 0, %s25
      %s26 = sphi 0, %s23
      %s27 = sphi 0, %s26
      %s43 = sphi 0, %s27
      %s49 = sphi 0, %s51
      %s52 = sphi 0, %s49
      %s53 = sphi 0, %s52
      %s69 = sphi 0, %s53
    $region4: #{tpu_custom_call.1} parent=1 // loop_header_branch
      %16 = sbr.rel (%p14) target = $region8
    $region5: #{tpu_custom_call.1} parent=1 // loop_body
      %s18 = ssub.s32 %s13, 1
      %s19 = ssub.s32 %s13, 2
      %s20 = sadd.s32 %s13, 1
      %s21 = ssub.s32 %s13, %s20
      %p22 = scmp.eq.s32.totalorder %s21, 0
      %s24 = sadd.s32 %s23, 1
      %s25 = scalar_select %p22, %s23, %s24
      %p28 = pneg %p22
      %p29 = scmp.eq.s32.totalorder %s13, 1
      %p30 = por %p28, %p29
      %p31 = scmp.ne.s32.totalorder %s23, %s26
      %p32 = scmp.eq.s32.totalorder %s13, 0
      %p33 = por %p31, %p32
      %p34 = scmp.ne.s32.totalorder %s23, %s26
      %p35 = scmp.eq.s32.totalorder %s18, 1
      %p36 = por %p34, %p35
      %p37 = scmp.ne.s32.totalorder %s26, %s27
      %p38 = scmp.eq.s32.totalorder %s18, 0
      %p39 = por %p37, %p38
      %p40 = scmp.ne.s32.totalorder %s26, %s27
      %p41 = scmp.eq.s32.totalorder %s19, 1
      %p42 = por %p40, %p41
      %p44 = scmp.ne.s32.totalorder %s27, %s43
      %p45 = scmp.eq.s32.totalorder %s19, 0
      %p46 = por %p44, %p45
      %s47 = ssub.s32 %s13, %s20
      %p48 = scmp.eq.s32.totalorder %s47, 0
      %s50 = sadd.s32 %s49, 1
      %s51 = scalar_select %p48, %s49, %s50
      %p54 = pneg %p48
      %p55 = scmp.eq.s32.totalorder %s13, 1
      %p56 = por %p54, %p55
      %p57 = scmp.ne.s32.totalorder %s49, %s52
      %p58 = scmp.eq.s32.totalorder %s13, 0
      %p59 = por %p57, %p58
      %p60 = scmp.ne.s32.totalorder %s49, %s52
      %p61 = scmp.eq.s32.totalorder %s18, 1
      %p62 = por %p60, %p61
      %p63 = scmp.ne.s32.totalorder %s52, %s53
      %p64 = scmp.eq.s32.totalorder %s18, 0
      %p65 = por %p63, %p64
      %p66 = scmp.ne.s32.totalorder %s52, %s53
      %p67 = scmp.eq.s32.totalorder %s19, 1
      %p68 = por %p66, %p67
      %p70 = scmp.ne.s32.totalorder %s53, %s69
      %p71 = scmp.eq.s32.totalorder %s19, 0
      %p72 = por %p70, %p71
      %p73 = scmp.le.s32.totalorder 1, %s13
      %p74 = scmp.lt.s32.totalorder %s13, 3
      %p75 = pnand %p73, %p74
      %p76 = pneg %p75
      // Predicated region
      $region9: #{tpu_custom_call.1} parent=5 // pred_check
        _
      $region10: #{tpu_custom_call.1} parent=5 // pred_check_branch
        %78 = sbr.rel (%p75) target = $region12
      $region11: #{tpu_custom_call.1} parent=5 // pred_region
        %s79 = ssub.s32 %s13, 1
      $region12: #{tpu_custom_call.1} parent=5 // pred_fallthru
        _
      %p80 = scmp.lt.s32.totalorder %s13, 2
      // Predicated region
      $region13: #{tpu_custom_call.1} parent=5 // pred_check
        %p81 = pneg %p80
      $region14: #{tpu_custom_call.1} parent=5 // pred_check_branch
        %83 = sbr.rel (%p81) target = $region16
      $region15: #{tpu_custom_call.1} parent=5 // pred_region
        // Predicated region
        $region17: #{tpu_custom_call.1} parent=15 // pred_check
          %p84 = pneg %p33
        $region18: #{tpu_custom_call.1} parent=15 // pred_check_branch
          %86 = sbr.rel (%p84) target = $region20
        $region19: #{tpu_custom_call.1} parent=15 // pred_region
          %s87 = sand.u32 %s23, 1
          %s88 = scalar_lea.sflag [#allocation3], %s87
          %s89 = sand.u32 %s23, 1
          %s90 = smul.addr %s89, 64
          %s91 = scalar_lea.vmem [#allocation2], %s90
          %s92 = smul.u32 4, %s13
          %s94 = ssub.s32 1024, 1024
          %95 = vsyncadd %s88, %s94
          %s96 = smul.addr %s92, 2
          %s97 = smul.addr %s96, 128
          %s98 = scalar_lea.hbm %s0, %s97
          %s99 = sshll.u32 %s91, 4
          %s100 = int_to_ptr.vmem [resolvable:$true] %s99
          %105 = dma.hbm_to_vmem [thread:$0]  %s98, 1024, %s100, %s88, 128, 128, 8
        $region20: #{tpu_custom_call.1} parent=15 // pred_fallthru
          _
      $region16: #{tpu_custom_call.1} parent=5 // pred_fallthru
        _
      %p106 = scmp.le.s32.totalorder 1, %s13
      %p107 = scmp.lt.s32.totalorder %s13, 3
      %p108 = pnand %p106, %p107
      %p109 = pneg %p108
      // Predicated region
      $region21: #{tpu_custom_call.1} parent=5 // pred_check
        _
      $region22: #{tpu_custom_call.1} parent=5 // pred_check_branch
        %111 = sbr.rel (%p108) target = $region24
      $region23: #{tpu_custom_call.1} parent=5 // pred_region
        %s112 = ssub.s32 %s13, 1
        %s113 = sand.u32 %s26, 1
        %s114 = scalar_lea.sflag [#allocation3], %s113
        %s115 = sand.u32 %s26, 1
        %s116 = smul.addr %s115, 64
        %s117 = scalar_lea.vmem [#allocation2], %s116
        // Predicated region
        $region25: #{tpu_custom_call.1} parent=23 // pred_check
          %p118 = pneg %p39
        $region26: #{tpu_custom_call.1} parent=23 // pred_check_branch
          %120 = sbr.rel (%p118) target = $region28
        $region27: #{tpu_custom_call.1} parent=23 // pred_region
          %121 = dma.done %s114, 1024
        $region28: #{tpu_custom_call.1} parent=23 // pred_fallthru
          _
        %s122 = sand.u32 %s26, 1
        %s123 = scalar_lea.sflag [#allocation3], %s122
        %s124 = sand.u32 %s26, 1
        %s125 = smul.addr %s124, 64
        %s126 = scalar_lea.vmem [#allocation2], %s125
        %p127 = pneg %p39
        %p128 = pneg %p36
        %p129 = pneg %p65
        %p130 = pneg %p62
        %s131 = sand.u32 %s52, 1
        %s132 = scalar_lea.sflag [#allocation4], %s131
        %s133 = sand.u32 %s52, 1
        %s134 = smul.addr %s133, 64
        %s135 = scalar_lea.vmem [#allocation5], %s134
        %s136 = smul.u32 4, %s18
        %s137 = smul.u32 4, %s18
        %v138 = vld [vmem:[%s117] sm:$0xff]
        %v139 = vld [vmem:[%s117 + $0x8] sm:$0xff]
        %v140 = vld [vmem:[%s117 + $0x10] sm:$0xff]
        %v141 = vld [vmem:[%s117 + $0x18] sm:$0xff]
        %v142 = vld [vmem:[%s117 + $0x20] sm:$0xff]
        %v143 = vld [vmem:[%s117 + $0x28] sm:$0xff]
        %v144 = vld [vmem:[%s117 + $0x30] sm:$0xff]
        %v145 = vld [vmem:[%s117 + $0x38] sm:$0xff]
        %v146 = vlaneseq
        %v147 = vshrl.u32 %v146, 7
        %v148 = vadd.s32 %v147, 8
        %v149 = vrot.slane %v138, 7
        %v150 = vrot.slane %v140, 7
        %v151 = vrot.slane %v142, 7
        %v152 = vrot.slane %v144, 7
        %v153 = vrot.slane %v139, 7
        %v154 = vrot.slane %v141, 7
        %v155 = vrot.slane %v143, 7
        %v156 = vrot.slane %v145, 7
        %vm157 = vcmp.lt.s32.totalorder %v147, 1
        %v158 = vsel %vm157, %v149, %v153
        %v159 = vsel %vm157, %v150, %v154
        %v160 = vsel %vm157, %v151, %v155
        %v161 = vsel %vm157, %v152, %v156
        %v162 = vsel %vm157, %v153, %v149
        %v163 = vsel %vm157, %v154, %v150
        %v164 = vsel %vm157, %v155, %v151
        %v165 = vsel %vm157, %v156, %v152
        %v166 = vrot.slane %v138, 1
        %v167 = vrot.slane %v140, 1
        %v168 = vrot.slane %v142, 1
        %v169 = vrot.slane %v144, 1
        %v170 = vrot.slane %v139, 1
        %v171 = vrot.slane %v141, 1
        %v172 = vrot.slane %v143, 1
        %v173 = vrot.slane %v145, 1
        %vm174 = vcmp.lt.s32.totalorder %v147, 7
        %v175 = vsel %vm174, %v166, %v170
        %v176 = vsel %vm174, %v167, %v171
        %v177 = vsel %vm174, %v168, %v172
        %v178 = vsel %vm174, %v169, %v173
        %v179 = vsel %vm174, %v170, %v166
        %v180 = vsel %vm174, %v171, %v167
        %v181 = vsel %vm174, %v172, %v168
        %v182 = vsel %vm174, %v173, %v169
        %vm183 = vcmp.eq.s32.totalorder %v147, 0
        %vm184 = vcmp.eq.s32.totalorder %v148, 0
        %v185 = vsel %vm183, 0.0, %v162
        %v186 = vsel %vm184, 0.0, %v158
        %v187 = vsel %vm183, 0.0, %v163
        %v188 = vsel %vm184, 0.0, %v159
        %v189 = vsel %vm183, 0.0, %v164
        %v190 = vsel %vm184, 0.0, %v160
        %v191 = vsel %vm183, 0.0, %v165
        %v192 = vsel %vm184, 0.0, %v161
        %vm193 = vcmp.eq.s32.totalorder %v147, 15
        %vm194 = vcmp.eq.s32.totalorder %v148, 15
        %v195 = vsel %vm193, 0.0, %v175
        %v196 = vsel %vm194, 0.0, %v179
        %v197 = vsel %vm193, 0.0, %v176
        %v198 = vsel %vm194, 0.0, %v180
        %v199 = vsel %vm193, 0.0, %v177
        %v200 = vsel %vm194, 0.0, %v181
        %v201 = vsel %vm193, 0.0, %v178
        %v202 = vsel %vm194, 0.0, %v182
        %v203 = vadd.f32 %v185, %v138
        %v204 = vadd.f32 %v186, %v139
        %v205 = vadd.f32 %v187, %v140
        %v206 = vadd.f32 %v188, %v141
        %v207 = vadd.f32 %v189, %v142
        %v208 = vadd.f32 %v190, %v143
        %v209 = vadd.f32 %v191, %v144
        %v210 = vadd.f32 %v192, %v145
        %v211 = vadd.f32 %v203, %v195
        %v212 = vadd.f32 %v204, %v196
        %v213 = vadd.f32 %v205, %v197
        %v214 = vadd.f32 %v206, %v198
        %v215 = vadd.f32 %v207, %v199
        %v216 = vadd.f32 %v208, %v200
        %v217 = vadd.f32 %v209, %v201
        %v218 = vadd.f32 %v210, %v202
        %v219 = vlaneseq
        %v220 = vand.u32 %v219, 127
        %vm221 = vcmask 1047680
        %222 = vrot.lane.b32.xlu0 %v211, 16
        %v223 = vpop.permute.xlu0 %222
        %v224 = vsel %vm221, %v223, %v211
        %225 = vrot.lane.b32.xlu0 %v212, 16
        %v226 = vpop.permute.xlu0 %225
        %v227 = vsel %vm221, %v226, %v212
        %228 = vrot.lane.b32.xlu0 %v213, 16
        %v229 = vpop.permute.xlu0 %228
        %v230 = vsel %vm221, %v229, %v213
        %231 = vrot.lane.b32.xlu0 %v214, 16
        %v232 = vpop.permute.xlu0 %231
        %v233 = vsel %vm221, %v232, %v214
        %234 = vrot.lane.b32.xlu0 %v215, 16
        %v235 = vpop.permute.xlu0 %234
        %v236 = vsel %vm221, %v235, %v215
        %237 = vrot.lane.b32.xlu0 %v216, 16
        %v238 = vpop.permute.xlu0 %237
        %v239 = vsel %vm221, %v238, %v216
        %240 = vrot.lane.b32.xlu0 %v217, 16
        %v241 = vpop.permute.xlu0 %240
        %v242 = vsel %vm221, %v241, %v217
        %243 = vrot.lane.b32.xlu0 %v218, 16
        %v244 = vpop.permute.xlu0 %243
        %v245 = vsel %vm221, %v244, %v218
        %246 = vrot.lane.b32.xlu0 %v224, 16
        %v247 = vpop.permute.xlu0 %246
        %248 = vrot.lane.b32.xlu0 %v227, 16
        %v249 = vpop.permute.xlu0 %248
        %250 = vrot.lane.b32.xlu0 %v230, 16
        %v251 = vpop.permute.xlu0 %250
        %252 = vrot.lane.b32.xlu0 %v233, 16
        %v253 = vpop.permute.xlu0 %252
        %254 = vrot.lane.b32.xlu0 %v236, 16
        %v255 = vpop.permute.xlu0 %254
        %256 = vrot.lane.b32.xlu0 %v239, 16
        %v257 = vpop.permute.xlu0 %256
        %258 = vrot.lane.b32.xlu0 %v242, 16
        %v259 = vpop.permute.xlu0 %258
        %260 = vrot.lane.b32.xlu0 %v245, 16
        %v261 = vpop.permute.xlu0 %260
        %v262 = vsel %vm221, %v247, %v211
        %v263 = vsel %vm221, %v249, %v212
        %v264 = vsel %vm221, %v251, %v213
        %v265 = vsel %vm221, %v253, %v214
        %v266 = vsel %vm221, %v255, %v215
        %v267 = vsel %vm221, %v257, %v216
        %v268 = vsel %vm221, %v259, %v217
        %v269 = vsel %vm221, %v261, %v218
        %vm270 = vcmp.eq.s32.totalorder %v220, 0
        %279 = vrot.lane.b32.xlu0 %v262, 113
        %v280 = vpop.permute.xlu0 %279
        %281 = vrot.lane.b32.xlu0 %v263, 113
        %v282 = vpop.permute.xlu0 %281
        %283 = vrot.lane.b32.xlu0 %v264, 113
        %v284 = vpop.permute.xlu0 %283
        %285 = vrot.lane.b32.xlu0 %v265, 113
        %v286 = vpop.permute.xlu0 %285
        %287 = vrot.lane.b32.xlu0 %v266, 113
        %v288 = vpop.permute.xlu0 %287
        %289 = vrot.lane.b32.xlu0 %v267, 113
        %v290 = vpop.permute.xlu0 %289
        %291 = vrot.lane.b32.xlu0 %v268, 113
        %v292 = vpop.permute.xlu0 %291
        %293 = vrot.lane.b32.xlu0 %v269, 113
        %v294 = vpop.permute.xlu0 %293
        %v303 = vsel %vm270, 0.0, %v280
        %v304 = vsel %vm270, 0.0, %v282
        %v305 = vsel %vm270, 0.0, %v284
        %v306 = vsel %vm270, 0.0, %v286
        %v307 = vsel %vm270, 0.0, %v288
        %v308 = vsel %vm270, 0.0, %v290
        %v309 = vsel %vm270, 0.0, %v292
        %v310 = vsel %vm270, 0.0, %v294
        %vm311 = vcmp.eq.s32.totalorder %v220, 15
        %312 = vrot.lane.b32.xlu0 %v262, 127
        %v313 = vpop.permute.xlu0 %312
        %314 = vrot.lane.b32.xlu0 %v263, 127
        %v315 = vpop.permute.xlu0 %314
        %316 = vrot.lane.b32.xlu0 %v264, 127
        %v317 = vpop.permute.xlu0 %316
        %318 = vrot.lane.b32.xlu0 %v265, 127
        %v319 = vpop.permute.xlu0 %318
        %320 = vrot.lane.b32.xlu0 %v266, 127
        %v321 = vpop.permute.xlu0 %320
        %322 = vrot.lane.b32.xlu0 %v267, 127
        %v323 = vpop.permute.xlu0 %322
        %324 = vrot.lane.b32.xlu0 %v268, 127
        %v325 = vpop.permute.xlu0 %324
        %326 = vrot.lane.b32.xlu0 %v269, 127
        %v327 = vpop.permute.xlu0 %326
        %v336 = vsel %vm311, 0.0, %v313
        %v337 = vsel %vm311, 0.0, %v315
        %v338 = vsel %vm311, 0.0, %v317
        %v339 = vsel %vm311, 0.0, %v319
        %v340 = vsel %vm311, 0.0, %v321
        %v341 = vsel %vm311, 0.0, %v323
        %v342 = vsel %vm311, 0.0, %v325
        %v343 = vsel %vm311, 0.0, %v327
        %v344 = vadd.f32 %v303, %v211
        %v345 = vadd.f32 %v304, %v212
        %v346 = vadd.f32 %v305, %v213
        %v347 = vadd.f32 %v306, %v214
        %v348 = vadd.f32 %v307, %v215
        %v349 = vadd.f32 %v308, %v216
        %v350 = vadd.f32 %v309, %v217
        %v351 = vadd.f32 %v310, %v218
        %v352 = vadd.f32 %v344, %v336
        %v353 = vadd.f32 %v345, %v337
        %v354 = vadd.f32 %v346, %v338
        %v355 = vadd.f32 %v347, %v339
        %v356 = vadd.f32 %v348, %v340
        %v357 = vadd.f32 %v349, %v341
        %v358 = vadd.f32 %v350, %v342
        %v359 = vadd.f32 %v351, %v343
        %v360 = vmul.f32 %v138, 9.0
        %v361 = vmul.f32 %v139, 9.0
        %v362 = vmul.f32 %v140, 9.0
        %v363 = vmul.f32 %v141, 9.0
        %v364 = vmul.f32 %v142, 9.0
        %v365 = vmul.f32 %v143, 9.0
        %v366 = vmul.f32 %v144, 9.0
        %v367 = vmul.f32 %v145, 9.0
        %v368 = vsub.f32 %v360, %v352
        %v369 = vsub.f32 %v361, %v353
        %v370 = vsub.f32 %v362, %v354
        %v371 = vsub.f32 %v363, %v355
        %v372 = vsub.f32 %v364, %v356
        %v373 = vsub.f32 %v365, %v357
        %v374 = vsub.f32 %v366, %v358
        %v375 = vsub.f32 %v367, %v359
        %vm376 = vcmask 130048
        %377 = vst.msk [vmem:[%s135] sm:$0xff] %vm376, %v368
        %378 = vst.msk [vmem:[%s135 + $0x8] sm:$0xff] %vm376, %v369
        %379 = vst.msk [vmem:[%s135 + $0x10] sm:$0xff] %vm376, %v370
        %380 = vst.msk [vmem:[%s135 + $0x18] sm:$0xff] %vm376, %v371
        %381 = vst.msk [vmem:[%s135 + $0x20] sm:$0xff] %vm376, %v372
        %382 = vst.msk [vmem:[%s135 + $0x28] sm:$0xff] %vm376, %v373
        %383 = vst.msk [vmem:[%s135 + $0x30] sm:$0xff] %vm376, %v374
        %384 = vst.msk [vmem:[%s135 + $0x38] sm:$0xff] %vm376, %v375
        %s385 = sand.u32 %s52, 1
        %s386 = scalar_lea.sflag [#allocation4], %s385
        %s387 = sand.u32 %s52, 1
        %s388 = smul.addr %s387, 64
        %s389 = scalar_lea.vmem [#allocation5], %s388
        // Predicated region
        $region29: #{tpu_custom_call.1} parent=23 // pred_check
          %p390 = pneg %p62
        $region30: #{tpu_custom_call.1} parent=23 // pred_check_branch
          %392 = sbr.rel (%p390) target = $region32
        $region31: #{tpu_custom_call.1} parent=23 // pred_region
          %s393 = smul.u32 4, %s18
          %s395 = ssub.s32 1024, 1024
          %396 = vsyncadd %s386, %s395
          %s397 = smul.addr %s393, 2
          %s398 = smul.addr %s397, 128
          %s399 = scalar_lea.hbm %s1, %s398
          %s400 = sshll.u32 %s389, 4
          %s401 = int_to_ptr.vmem [resolvable:$true] %s400
          %406 = dma.vmem_to_hbm [thread:$0]  %s401, 1024, %s399, %s386, 128, 128, 8
        $region32: #{tpu_custom_call.1} parent=23 // pred_fallthru
          _
      $region24: #{tpu_custom_call.1} parent=5 // pred_fallthru
        _
      %p407 = scmp.le.s32.totalorder 2, %s13
      // Predicated region
      $region33: #{tpu_custom_call.1} parent=5 // pred_check
        %p408 = pneg %p407
      $region34: #{tpu_custom_call.1} parent=5 // pred_check_branch
        %410 = sbr.rel (%p408) target = $region36
      $region35: #{tpu_custom_call.1} parent=5 // pred_region
        %s411 = ssub.s32 %s13, 2
        // Predicated region
        $region37: #{tpu_custom_call.1} parent=35 // pred_check
          %p412 = pneg %p68
        $region38: #{tpu_custom_call.1} parent=35 // pred_check_branch
          %414 = sbr.rel (%p412) target = $region40
        $region39: #{tpu_custom_call.1} parent=35 // pred_region
          %s415 = sand.u32 %s53, 1
          %s416 = scalar_lea.sflag [#allocation4], %s415
          %s417 = sand.u32 %s53, 1
          %s418 = smul.addr %s417, 64
          %s419 = scalar_lea.vmem [#allocation5], %s418
          %420 = dma.done %s416, 1024
        $region40: #{tpu_custom_call.1} parent=35 // pred_fallthru
          _
      $region36: #{tpu_custom_call.1} parent=5 // pred_fallthru
        _
    $region6: #{tpu_custom_call.1} parent=1 // loop_footer
      %s17 = sadd.s32 1, %s13
    $region7: #{tpu_custom_call.1} parent=1 // loop_footer_branch
      %12 = sbr.rel target = $region3
    $region8: #{tpu_custom_call.1} parent=1 // loop_exit
      _
    %421 = vsyncpa [#allocation3], 1
    %s422 = scalar_lea.sflag [#allocation3], 1
    %423 = vsyncpa %s422, 1
    %424 = vsyncpa [#allocation4], 1
    %s425 = scalar_lea.sflag [#allocation4], 1
    %426 = vsyncpa %s425, 1

</llo_original>
